<compile_context>
chip_gen: v5e
topology: v5e:2x2
jax: 0.10.0
libtpu: 0.0.40
codegen_flags: <defaults>
</compile_context>

<pallas_src>
import jax
import jax.numpy as jnp
from jax.experimental import pallas as pl
from jax.experimental.pallas import tpu as pltpu

MXU_DTYPE = jnp.bfloat16   # matmul operand dtype (accumulation stays f32)
LANE = 128                 # TPU lane width: pad output feature dims to this
TB_MAX = 512               # max batch tile rows
TB_MIN = 32                # min batch tile rows (bf16 native tile is (16,128))


def _round_up(n, m):
    return ((n + m - 1) // m) * m


def _cdiv(a, b):
    return (a + b - 1) // b


def _choose_tb(batch):
    """Batch tile size: >=TB_MIN, <=TB_MAX, and >=2 grid steps for larger B
    (so the 'parallel' axis can shard across v7x's two TensorCores)."""
    if batch <= 2 * TB_MIN:
        return TB_MIN
    n_tiles = max(2, _cdiv(batch, TB_MAX))
    tb = _round_up(_cdiv(batch, n_tiles), TB_MIN)
    return min(TB_MAX, tb)


# --------------------------------------------------------------------------- #
# Kernel
# --------------------------------------------------------------------------- #
def make_fused_kernel(n_layers, action_dim):
    """Fused block-diagonal actor+critic MLP for one batch tile.

    Refs: x_ref, (w_ref, b_ref) * n_layers, out_ref.
    Output lanes: [0, action_dim) = tanh(mu), lane action_dim = v (linear)."""

    def fused_actor_critic_kernel(*refs):
        x_ref, out_ref = refs[0], refs[-1]
        wb = refs[1:-1]

        h = x_ref[...]                                    # bf16 (pre-cast on host)
        z = None
        for li in range(n_layers):
            w = wb[2 * li][...]                           # bf16
            b = wb[2 * li + 1][...]                       # f32 (1, out)
            z = jnp.dot(h, w, preferred_element_type=jnp.float32) + b
            if li < n_layers - 1:
                h = jnp.maximum(z, 0.0).astype(MXU_DTYPE)  # ReLU in f32, cast for MXU

        # tanh only on the mu lanes; the critic lane (and zero padding) stays linear.
        lane = jax.lax.broadcasted_iota(jnp.int32, z.shape, dimension=1)
        out_ref[...] = jnp.where(lane < action_dim, jnp.tanh(z), z).astype(out_ref.dtype)

    return fused_actor_critic_kernel


def _pallas_forward(x_bf16, flat_params, tb, state_dim, out_pad, grid,
                    n_layers, action_dim, single_buffer_consts):
    row_map = lambda i: (i, 0)       # batch-tiled arrays
    const_map = lambda i: (0, 0)     # weights/biases: VMEM-resident across steps
    const_kwargs = (
        dict(pipeline_mode=pl.Buffered(1)) if single_buffer_consts else {}
    )

    in_specs = [pl.BlockSpec((tb, state_dim), row_map)]
    in_specs += [pl.BlockSpec(p.shape, const_map, **const_kwargs) for p in flat_params]

    return pl.pallas_call(
        make_fused_kernel(n_layers, action_dim),
        out_shape=jax.ShapeDtypeStruct((grid * tb, out_pad), jnp.float32),
        grid=(grid,),
        in_specs=in_specs,
        out_specs=pl.BlockSpec((tb, out_pad), row_map),
        compiler_params=pltpu.CompilerParams(
            dimension_semantics=("parallel",)),
    )(x_bf16, *flat_params)


# --------------------------------------------------------------------------- #
# Wrapper
# --------------------------------------------------------------------------- #
def actor_critic_forward(x, fused_params, logstd, action_dim):
    """x: [B, state_dim] f32 ('state' from the representation).

    Returns (mu [B, action_dim] f32, std [action_dim] f32, v [B] f32)."""
    B, S = x.shape
    n_layers = len(fused_params)
    out_pad = fused_params[-1][0].shape[1]          # padded fused output width

    tb = _choose_tb(B)
    grid = _cdiv(B, tb)
    b_pad = grid * tb
    if b_pad != B:
        x = jnp.pad(x, ((0, b_pad - B), (0, 0)))    # pad only the ragged last tile
    x_bf16 = x.astype(MXU_DTYPE)

    flat_params = tuple(p for layer in fused_params for p in layer)

    out = None
    for single_buf in (True, False):
        try:
            out = _pallas_forward(x_bf16, flat_params, tb, S, out_pad, grid,
                                  n_layers, action_dim, single_buf)
            break
        except Exception:                           # Buffered(1) unsupported -> default
            if not single_buf:
                raise

    mu = out[:B, :action_dim]
    v = out[:B, action_dim]
    std = jnp.exp(logstd)                           # batch-independent; no kernel needed
    return mu, std, v


# --------------------------------------------------------------------------- #
# Parameter construction (synthetic, deterministic) + block-diagonal packing
# --------------------------------------------------------------------------- #
def init_raw_params(key, state_dim, action_dim, actor_hidden, critic_hidden):
    """Unpadded f32 params mirroring ActorNet / CriticNet Linear stacks."""
    def mlp(k, dims):
        keys = jax.random.split(k, len(dims) - 1)
        layers = []
        for kk, d_in, d_out in zip(keys, dims[:-1], dims[1:]):
            scale = 1.0 / jnp.sqrt(jnp.float32(d_in))
            w = jax.random.uniform(kk, (d_in, d_out), jnp.float32, -scale, scale)
            b = jax.random.uniform(jax.random.fold_in(kk, 1), (d_out,),
                                   jnp.float32, -scale, scale)
            layers.append((w, b))
        return layers

    ka, kc = jax.random.split(key)
    actor_layers = mlp(ka, [state_dim] + list(actor_hidden) + [action_dim])
    critic_layers = mlp(kc, [state_dim] + list(critic_hidden) + [1])
    logstd = -jnp.ones((action_dim,), jnp.float32)   # nn.Parameter(-ones(A))
    return actor_layers, critic_layers, logstd


def pack_fused_params(actor_layers, critic_layers):
    """Fuse actor & critic MLPs into one block-diagonal stack.

    Layer 0:   W = [Wa1 | Wc1]            (shared state input)
    Hidden k:  W = blockdiag(Wa_k, Wc_k)
    Final:     W[:Ha, :A] = Wa_last (mu lanes 0..A-1), W[Ha:, A] = Wc_last (v lane A)
    Output widths are zero-padded to a multiple of LANE; zero padding is exact
    (padded hidden units are ReLU(0)=0 and their downstream weight rows are 0).
    Weights stored bf16 (MXU operands), biases f32."""
    assert len(actor_layers) == len(critic_layers), "equal-depth MLPs assumed"
    n_layers = len(actor_layers)
    action_dim = actor_layers[-1][0].shape[1]
    assert action_dim + 1 <= LANE

    params = []
    prev_pad = actor_layers[0][0].shape[0]   # state_dim (shared input, unpadded)
    prev_c_off = 0                           # row offset of the critic block
    for li in range(n_layers):
        wa, ba = actor_layers[li]
        wc, bc = critic_layers[li]
        da = wa.shape[1]
        if li < n_layers - 1:
            dc = wc.shape[1]
            out_pad = _round_up(da + dc, LANE)
            w = jnp.zeros((prev_pad, out_pad), jnp.float32)
            b = jnp.zeros((1, out_pad), jnp.float32)
            w = w.at[:wa.shape[0], :da].set(wa)
            w = w.at[prev_c_off:prev_c_off + wc.shape[0], da:da + dc].set(wc)
            b = b.at[0, :da].set(ba).at[0, da:da + dc].set(bc)
            params.append((w.astype(MXU_DTYPE), b))
            prev_pad, prev_c_off = out_pad, da
        else:
            out_pad = _round_up(da + 1, LANE)
            w = jnp.zeros((prev_pad, out_pad), jnp.float32)
            b = jnp.zeros((1, out_pad), jnp.float32)
            w = w.at[:wa.shape[0], :da].set(wa)                                    # mu lanes
            w = w.at[prev_c_off:prev_c_off + wc.shape[0], da:da + 1].set(wc)       # v lane
            b = b.at[0, :da].set(ba).at[0, da].set(bc[0])
            params.append((w.astype(MXU_DTYPE), b))
    return params, action_dim


# --------------------------------------------------------------------------- #
if __name__ == "__main__":
    B, STATE_DIM, ACTION_DIM = 8, 32, 16
    HIDDEN = (64, 64)

    key = jax.random.PRNGKey(0)
    kx, kp = jax.random.split(key)
    x = jax.random.normal(kx, (B, STATE_DIM), jnp.float32)

    actor_layers, critic_layers, logstd = init_raw_params(
        kp, STATE_DIM, ACTION_DIM, HIDDEN, HIDDEN)
    fused_params, _ = pack_fused_params(actor_layers, critic_layers)

    mu, std, v = actor_critic_forward(x, fused_params, logstd, ACTION_DIM)
    jax.block_until_ready((mu, std, v))

    # ---- pure-JAX f32 reference of the same forward ----
    def mlp_ref(inp, layers, final_act):
        h = inp
        for i, (w, b) in enumerate(layers):
            h = h @ w + b
            if i < len(layers) - 1:
                h = jnp.maximum(h, 0.0)
        return final_act(h)

    mu_ref = mlp_ref(x, actor_layers, jnp.tanh)
    v_ref = mlp_ref(x, critic_layers, lambda z: z)[:, 0]
    std_ref = jnp.exp(logstd)

    assert mu.shape == (B, ACTION_DIM) and std.shape == (ACTION_DIM,) and v.shape == (B,)
    # bf16 MXU operands (f32 accumulate) -> relaxed tolerance vs the f32 reference.
    assert jnp.allclose(mu, mu_ref, atol=3e-2, rtol=3e-2), "mu mismatch"
    assert jnp.allclose(v, v_ref, atol=5e-2, rtol=5e-2), "v mismatch"
    assert jnp.allclose(std, std_ref, atol=1e-6), "std mismatch"

    # TODO(synk): the `representation` submodule is assumed to be the identity
    # ('state' == observation features); DiagGaussianDistribution sampling /
    # log_prob is host-side policy glue and not part of the tensor hot path.
    print("KERNEL_OK")
</pallas_src>

<mosaic_0001>
module attributes {stable_mosaic.version = 11 : i64} {
  func.func @fused_actor_critic_kernel(%arg0: i32, %arg1: memref<32x32xbf16, #tpu.memory_space<vmem>>, %arg2: memref<32x128xbf16, #tpu.memory_space<vmem>>, %arg3: memref<1x128xf32, #tpu.memory_space<vmem>>, %arg4: memref<128x128xbf16, #tpu.memory_space<vmem>>, %arg5: memref<1x128xf32, #tpu.memory_space<vmem>>, %arg6: memref<128x128xbf16, #tpu.memory_space<vmem>>, %arg7: memref<1x128xf32, #tpu.memory_space<vmem>>, %arg8: memref<32x128xf32, #tpu.memory_space<vmem>>) attributes {dimension_semantics = [#tpu.dimension_semantics<parallel>], iteration_bounds = array<i64: 1>, scalar_prefetch = 0 : i64, scratch_operands = 0 : i64, tpu.core_type = #tpu.core_type<tc>, window_params = [{transform_indices = @transform_0, window_bounds = array<i64: 32, 32>}, {pipeline_mode = #tpu.pipeline_mode<synchronous>, transform_indices = @transform_1, window_bounds = array<i64: 32, 128>}, {pipeline_mode = #tpu.pipeline_mode<synchronous>, transform_indices = @transform_2, window_bounds = array<i64: 1, 128>}, {pipeline_mode = #tpu.pipeline_mode<synchronous>, transform_indices = @transform_3, window_bounds = array<i64: 128, 128>}, {pipeline_mode = #tpu.pipeline_mode<synchronous>, transform_indices = @transform_4, window_bounds = array<i64: 1, 128>}, {pipeline_mode = #tpu.pipeline_mode<synchronous>, transform_indices = @transform_5, window_bounds = array<i64: 128, 128>}, {pipeline_mode = #tpu.pipeline_mode<synchronous>, transform_indices = @transform_6, window_bounds = array<i64: 1, 128>}, {transform_indices = @transform_7, window_bounds = array<i64: 32, 128>}]} {
    %c0 = arith.constant 0 : index
    %c0_0 = arith.constant 0 : index
    %0 = vector.load %arg1[%c0, %c0_0] : memref<32x32xbf16, #tpu.memory_space<vmem>>, vector<32x32xbf16>
    %c0_1 = arith.constant 0 : index
    %c0_2 = arith.constant 0 : index
    %1 = vector.load %arg2[%c0_1, %c0_2] : memref<32x128xbf16, #tpu.memory_space<vmem>>, vector<32x128xbf16>
    %c0_3 = arith.constant 0 : index
    %c0_4 = arith.constant 0 : index
    %2 = vector.load %arg3[%c0_3, %c0_4] : memref<1x128xf32, #tpu.memory_space<vmem>>, vector<1x128xf32>
    %cst = arith.constant dense<0.000000e+00> : vector<32x128xf32>
    %3 = tpu.matmul %0, %1, %cst {dimension_numbers = #tpu.dot_dimension_numbers<[1], [0], [0], [1], [0, 0, 1, 1], [], []>} : vector<32x32xbf16>, vector<32x128xbf16>, vector<32x128xf32> -> vector<32x128xf32>
    %4 = vector.broadcast %2 : vector<1x128xf32> to vector<32x128xf32>
    %5 = arith.addf %3, %4 : vector<32x128xf32>
    %cst_5 = arith.constant 0.000000e+00 : f32
    %6 = vector.broadcast %cst_5 : f32 to vector<32x128xf32>
    %7 = arith.maximumf %5, %6 : vector<32x128xf32>
    %8 = arith.truncf %7 : vector<32x128xf32> to vector<32x128xbf16>
    %c0_6 = arith.constant 0 : index
    %c0_7 = arith.constant 0 : index
    %9 = vector.load %arg4[%c0_6, %c0_7] : memref<128x128xbf16, #tpu.memory_space<vmem>>, vector<128x128xbf16>
    %c0_8 = arith.constant 0 : index
    %c0_9 = arith.constant 0 : index
    %10 = vector.load %arg5[%c0_8, %c0_9] : memref<1x128xf32, #tpu.memory_space<vmem>>, vector<1x128xf32>
    %cst_10 = arith.constant dense<0.000000e+00> : vector<32x128xf32>
    %11 = tpu.matmul %8, %9, %cst_10 {dimension_numbers = #tpu.dot_dimension_numbers<[1], [0], [0], [1], [0, 0, 1, 1], [], []>} : vector<32x128xbf16>, vector<128x128xbf16>, vector<32x128xf32> -> vector<32x128xf32>
    %12 = vector.broadcast %10 : vector<1x128xf32> to vector<32x128xf32>
    %13 = arith.addf %11, %12 : vector<32x128xf32>
    %cst_11 = arith.constant 0.000000e+00 : f32
    %14 = vector.broadcast %cst_11 : f32 to vector<32x128xf32>
    %15 = arith.maximumf %13, %14 : vector<32x128xf32>
    %16 = arith.truncf %15 : vector<32x128xf32> to vector<32x128xbf16>
    %c0_12 = arith.constant 0 : index
    %c0_13 = arith.constant 0 : index
    %17 = vector.load %arg6[%c0_12, %c0_13] : memref<128x128xbf16, #tpu.memory_space<vmem>>, vector<128x128xbf16>
    %c0_14 = arith.constant 0 : index
    %c0_15 = arith.constant 0 : index
    %18 = vector.load %arg7[%c0_14, %c0_15] : memref<1x128xf32, #tpu.memory_space<vmem>>, vector<1x128xf32>
    %cst_16 = arith.constant dense<0.000000e+00> : vector<32x128xf32>
    %19 = tpu.matmul %16, %17, %cst_16 {dimension_numbers = #tpu.dot_dimension_numbers<[1], [0], [0], [1], [0, 0, 1, 1], [], []>} : vector<32x128xbf16>, vector<128x128xbf16>, vector<32x128xf32> -> vector<32x128xf32>
    %20 = vector.broadcast %18 : vector<1x128xf32> to vector<32x128xf32>
    %21 = arith.addf %19, %20 : vector<32x128xf32>
    %22 = tpu.iota {dimensions = array<i32: 1>} : vector<32x128xi32>
    %c16_i32 = arith.constant 16 : i32
    %23 = vector.broadcast %c16_i32 : i32 to vector<32x128xi32>
    %24 = arith.cmpi slt, %22, %23 : vector<32x128xi32>
    %25 = math.tanh %21 : vector<32x128xf32>
    %26 = arith.select %24, %25, %21 : vector<32x128xi1>, vector<32x128xf32>
    %c0_17 = arith.constant 0 : index
    %c0_18 = arith.constant 0 : index
    %27 = vector.load %arg8[%c0_17, %c0_18] : memref<32x128xf32, #tpu.memory_space<vmem>>, vector<32x128xf32>
    tpu.vector_store %arg8[%c0_17, %c0_18], %26 {strides = array<i32>} : memref<32x128xf32, #tpu.memory_space<vmem>>, vector<32x128xf32>,
    return
  }
  func.func @transform_0(%arg0: i32) -> (i32, i32) {
    %c0_i32 = arith.constant 0 : i32
    %c0_i32_0 = arith.constant 0 : i32
    return %arg0, %c0_i32 : i32, i32
  }
  func.func @transform_1(%arg0: i32) -> (i32, i32) {
    %c0_i32 = arith.constant 0 : i32
    %c0_i32_0 = arith.constant 0 : i32
    %c0_i32_1 = arith.constant 0 : i32
    return %c0_i32, %c0_i32_0 : i32, i32
  }
  func.func @transform_2(%arg0: i32) -> (i32, i32) {
    %c0_i32 = arith.constant 0 : i32
    %c0_i32_0 = arith.constant 0 : i32
    %c0_i32_1 = arith.constant 0 : i32
    return %c0_i32, %c0_i32_0 : i32, i32
  }
  func.func @transform_3(%arg0: i32) -> (i32, i32) {
    %c0_i32 = arith.constant 0 : i32
    %c0_i32_0 = arith.constant 0 : i32
    %c0_i32_1 = arith.constant 0 : i32
    return %c0_i32, %c0_i32_0 : i32, i32
  }
  func.func @transform_4(%arg0: i32) -> (i32, i32) {
    %c0_i32 = arith.constant 0 : i32
    %c0_i32_0 = arith.constant 0 : i32
    %c0_i32_1 = arith.constant 0 : i32
    return %c0_i32, %c0_i32_0 : i32, i32
  }
  func.func @transform_5(%arg0: i32) -> (i32, i32) {
    %c0_i32 = arith.constant 0 : i32
    %c0_i32_0 = arith.constant 0 : i32
    %c0_i32_1 = arith.constant 0 : i32
    return %c0_i32, %c0_i32_0 : i32, i32
  }
  func.func @transform_6(%arg0: i32) -> (i32, i32) {
    %c0_i32 = arith.constant 0 : i32
    %c0_i32_0 = arith.constant 0 : i32
    %c0_i32_1 = arith.constant 0 : i32
    return %c0_i32, %c0_i32_0 : i32, i32
  }
  func.func @transform_7(%arg0: i32) -> (i32, i32) {
    %c0_i32 = arith.constant 0 : i32
    %c0_i32_0 = arith.constant 0 : i32
    return %arg0, %c0_i32 : i32, i32
  }
}

module attributes {stable_mosaic.version = 11 : i64} {
  func.func @fused_actor_critic_kernel(%arg0: i32, %arg1: memref<32x32xbf16, #tpu.memory_space<vmem>>, %arg2: memref<32x128xbf16, #tpu.memory_space<vmem>>, %arg3: memref<1x128xf32, #tpu.memory_space<vmem>>, %arg4: memref<128x128xbf16, #tpu.memory_space<vmem>>, %arg5: memref<1x128xf32, #tpu.memory_space<vmem>>, %arg6: memref<128x128xbf16, #tpu.memory_space<vmem>>, %arg7: memref<1x128xf32, #tpu.memory_space<vmem>>, %arg8: memref<32x128xf32, #tpu.memory_space<vmem>>) attributes {dimension_semantics = [#tpu.dimension_semantics<parallel>], iteration_bounds = array<i64: 1>, scalar_prefetch = 0 : i64, scratch_operands = 0 : i64, tpu.core_type = #tpu.core_type<tc>, window_params = [{transform_indices = @transform_0, window_bounds = array<i64: 32, 32>}, {pipeline_mode = #tpu.pipeline_mode<synchronous>, transform_indices = @transform_1, window_bounds = array<i64: 32, 128>}, {pipeline_mode = #tpu.pipeline_mode<synchronous>, transform_indices = @transform_2, window_bounds = array<i64: 1, 128>}, {pipeline_mode = #tpu.pipeline_mode<synchronous>, transform_indices = @transform_3, window_bounds = array<i64: 128, 128>}, {pipeline_mode = #tpu.pipeline_mode<synchronous>, transform_indices = @transform_4, window_bounds = array<i64: 1, 128>}, {pipeline_mode = #tpu.pipeline_mode<synchronous>, transform_indices = @transform_5, window_bounds = array<i64: 128, 128>}, {pipeline_mode = #tpu.pipeline_mode<synchronous>, transform_indices = @transform_6, window_bounds = array<i64: 1, 128>}, {transform_indices = @transform_7, window_bounds = array<i64: 32, 128>}]} {
    %c0 = arith.constant 0 : index
    %c0_0 = arith.constant 0 : index
    %0 = vector.load %arg1[%c0, %c0_0] : memref<32x32xbf16, #tpu.memory_space<vmem>>, vector<32x32xbf16>
    %c0_1 = arith.constant 0 : index
    %c0_2 = arith.constant 0 : index
    %1 = vector.load %arg2[%c0_1, %c0_2] : memref<32x128xbf16, #tpu.memory_space<vmem>>, vector<32x128xbf16>
    %c0_3 = arith.constant 0 : index
    %c0_4 = arith.constant 0 : index
    %2 = vector.load %arg3[%c0_3, %c0_4] : memref<1x128xf32, #tpu.memory_space<vmem>>, vector<1x128xf32>
    %cst = arith.constant dense<0.000000e+00> : vector<32x128xf32>
    %3 = tpu.matmul %0, %1, %cst {dimension_numbers = #tpu.dot_dimension_numbers<[1], [0], [0], [1], [0, 0, 1, 1], [], []>} : vector<32x32xbf16>, vector<32x128xbf16>, vector<32x128xf32> -> vector<32x128xf32>
    %4 = vector.broadcast %2 : vector<1x128xf32> to vector<32x128xf32>
    %5 = arith.addf %3, %4 : vector<32x128xf32>
    %cst_5 = arith.constant 0.000000e+00 : f32
    %6 = vector.broadcast %cst_5 : f32 to vector<32x128xf32>
    %7 = arith.maximumf %5, %6 : vector<32x128xf32>
    %8 = arith.truncf %7 : vector<32x128xf32> to vector<32x128xbf16>
    %c0_6 = arith.constant 0 : index
    %c0_7 = arith.constant 0 : index
    %9 = vector.load %arg4[%c0_6, %c0_7] : memref<128x128xbf16, #tpu.memory_space<vmem>>, vector<128x128xbf16>
    %c0_8 = arith.constant 0 : index
    %c0_9 = arith.constant 0 : index
    %10 = vector.load %arg5[%c0_8, %c0_9] : memref<1x128xf32, #tpu.memory_space<vmem>>, vector<1x128xf32>
    %cst_10 = arith.constant dense<0.000000e+00> : vector<32x128xf32>
    %11 = tpu.matmul %8, %9, %cst_10 {dimension_numbers = #tpu.dot_dimension_numbers<[1], [0], [0], [1], [0, 0, 1, 1], [], []>} : vector<32x128xbf16>, vector<128x128xbf16>, vector<32x128xf32> -> vector<32x128xf32>
    %12 = vector.broadcast %10 : vector<1x128xf32> to vector<32x128xf32>
    %13 = arith.addf %11, %12 : vector<32x128xf32>
    %cst_11 = arith.constant 0.000000e+00 : f32
    %14 = vector.broadcast %cst_11 : f32 to vector<32x128xf32>
    %15 = arith.maximumf %13, %14 : vector<32x128xf32>
    %16 = arith.truncf %15 : vector<32x128xf32> to vector<32x128xbf16>
    %c0_12 = arith.constant 0 : index
    %c0_13 = arith.constant 0 : index
    %17 = vector.load %arg6[%c0_12, %c0_13] : memref<128x128xbf16, #tpu.memory_space<vmem>>, vector<128x128xbf16>
    %c0_14 = arith.constant 0 : index
    %c0_15 = arith.constant 0 : index
    %18 = vector.load %arg7[%c0_14, %c0_15] : memref<1x128xf32, #tpu.memory_space<vmem>>, vector<1x128xf32>
    %cst_16 = arith.constant dense<0.000000e+00> : vector<32x128xf32>
    %19 = tpu.matmul %16, %17, %cst_16 {dimension_numbers = #tpu.dot_dimension_numbers<[1], [0], [0], [1], [0, 0, 1, 1], [], []>} : vector<32x128xbf16>, vector<128x128xbf16>, vector<32x128xf32> -> vector<32x128xf32>
    %20 = vector.broadcast %18 : vector<1x128xf32> to vector<32x128xf32>
    %21 = arith.addf %19, %20 : vector<32x128xf32>
    %22 = tpu.iota {dimensions = array<i32: 1>} : vector<32x128xi32>
    %c16_i32 = arith.constant 16 : i32
    %23 = vector.broadcast %c16_i32 : i32 to vector<32x128xi32>
    %24 = arith.cmpi slt, %22, %23 : vector<32x128xi32>
    %25 = math.tanh %21 : vector<32x128xf32>
    %26 = arith.select %24, %25, %21 : vector<32x128xi1>, vector<32x128xf32>
    %c0_17 = arith.constant 0 : index
    %c0_18 = arith.constant 0 : index
    %27 = vector.load %arg8[%c0_17, %c0_18] : memref<32x128xf32, #tpu.memory_space<vmem>>, vector<32x128xf32>
    tpu.vector_store %arg8[%c0_17, %c0_18], %26 {strides = array<i32>} : memref<32x128xf32, #tpu.memory_space<vmem>>, vector<32x128xf32>,
    return
  }
  func.func @transform_0(%arg0: i32) -> (i32, i32) {
    %c0_i32 = arith.constant 0 : i32
    %c0_i32_0 = arith.constant 0 : i32
    return %arg0, %c0_i32 : i32, i32
  }
  func.func @transform_1(%arg0: i32) -> (i32, i32) {
    %c0_i32 = arith.constant 0 : i32
    %c0_i32_0 = arith.constant 0 : i32
    %c0_i32_1 = arith.constant 0 : i32
    return %c0_i32, %c0_i32_0 : i32, i32
  }
  func.func @transform_2(%arg0: i32) -> (i32, i32) {
    %c0_i32 = arith.constant 0 : i32
    %c0_i32_0 = arith.constant 0 : i32
    %c0_i32_1 = arith.constant 0 : i32
    return %c0_i32, %c0_i32_0 : i32, i32
  }
  func.func @transform_3(%arg0: i32) -> (i32, i32) {
    %c0_i32 = arith.constant 0 : i32
    %c0_i32_0 = arith.constant 0 : i32
    %c0_i32_1 = arith.constant 0 : i32
    return %c0_i32, %c0_i32_0 : i32, i32
  }
  func.func @transform_4(%arg0: i32) -> (i32, i32) {
    %c0_i32 = arith.constant 0 : i32
    %c0_i32_0 = arith.constant 0 : i32
    %c0_i32_1 = arith.constant 0 : i32
    return %c0_i32, %c0_i32_0 : i32, i32
  }
  func.func @transform_5(%arg0: i32) -> (i32, i32) {
    %c0_i32 = arith.constant 0 : i32
    %c0_i32_0 = arith.constant 0 : i32
    %c0_i32_1 = arith.constant 0 : i32
    return %c0_i32, %c0_i32_0 : i32, i32
  }
  func.func @transform_6(%arg0: i32) -> (i32, i32) {
    %c0_i32 = arith.constant 0 : i32
    %c0_i32_0 = arith.constant 0 : i32
    %c0_i32_1 = arith.constant 0 : i32
    return %c0_i32, %c0_i32_0 : i32, i32
  }
  func.func @transform_7(%arg0: i32) -> (i32, i32) {
    %c0_i32 = arith.constant 0 : i32
    %c0_i32_0 = arith.constant 0 : i32
    return %arg0, %c0_i32 : i32, i32
  }
}

</mosaic_0001>

<llo_original>
// kernel: tpu_custom_call.1
$region0: #{tpu_custom_call.1}
  #allocation0 [shape = 'u32[]', space=smem, size = 0x4, offset = 0x4, fixed_abs, tag = 'smem constant byte address 0x4 - core index']
  #allocation1 [shape = 'u32[72,128]{1,0:T(1,128)}', space=vmem, size = 0x9000, scoped, tag = 'internal scratch']
  %s0 = inlined_call_operand.hbm [shape: bf16[32,32], index: 0, kind: input, shape index: {}]
  %s1 = inlined_call_operand.hbm [shape: bf16[32,128], index: 1, kind: input, shape index: {}]
  %s2 = inlined_call_operand.vmem [shape: f32[1,128], index: 2, kind: input, shape index: {}]
  %s3 = inlined_call_operand.hbm [shape: bf16[128,128], index: 3, kind: input, shape index: {}]
  %s4 = inlined_call_operand.vmem [shape: f32[1,128], index: 4, kind: input, shape index: {}]
  %s5 = inlined_call_operand.hbm [shape: bf16[128,128], index: 5, kind: input, shape index: {}]
  %s6 = inlined_call_operand.vmem [shape: f32[1,128], index: 6, kind: input, shape index: {}]
  %s7 = inlined_call_operand.hbm [shape: f32[32,128], index: 7, kind: output, shape index: {}]
  %s8 = sld [smem:[#allocation0]]
  $region54: #{tpu_custom_call.1} parent=0
    _
  %s10 = ssub.s32 1, %s8
  %s11 = scalar_select 0, %s10, %s8
  $region1: #{tpu_custom_call.1} parent=0
    #allocation2 [shape = 'u8[8192]{0}', space=vmem, size = 0x2000, scoped, tag = 'input window, operand 0, single buffered']
    #allocation3 [shape = 's32[1]{0}', space=sflag, size = 0x4, scoped, tag = 'scoped memory for tpu_custom_call.1']
    #allocation4 [shape = 's32[1]{0}', space=sflag, size = 0x4, scoped, tag = 'scoped memory for tpu_custom_call.1']
    #allocation5 [shape = 'u8[8192]{0}', space=vmem, size = 0x2000, scoped, tag = 'input window, operand 1, single buffered']
    #allocation6 [shape = 's32[1]{0}', space=sflag, size = 0x4, scoped, tag = 'scoped memory for tpu_custom_call.1']
    #allocation7 [shape = 'u8[32768]{0}', space=vmem, size = 0x8000, scoped, tag = 'input window, operand 3, single buffered']
    #allocation8 [shape = 'u8[32768]{0}', space=vmem, size = 0x8000, scoped, tag = 'input window, operand 5, single buffered']
    #allocation9 [shape = 's32[1]{0}', space=sflag, size = 0x4, scoped, tag = 'scoped memory for tpu_custom_call.1']
    #allocation10 [shape = 'u8[16384]{0}', space=vmem, size = 0x4000, scoped, tag = 'output window, operand 0, single buffered']
    %12 = vsyncpa [#allocation3], 0
    %13 = vsyncpa [#allocation6], 0
    %14 = vsyncpa [#allocation9], 0
    %15 = vsyncpa [#allocation4], 0
    // Predicated region
    $region2: #{tpu_custom_call.1} parent=1 // pred_check
      _
    $region3: #{tpu_custom_call.1} parent=1 // pred_check_branch
      %17 = sbr.rel (0) target = $region5
    $region4: #{tpu_custom_call.1} parent=1 // pred_region
      %19 = vsyncadd [#allocation3], 0
      %s20 = sshll.u32 %s0, 4
      %s21 = int_to_ptr.hbm [resolvable:$true] %s20
      %s22 = sshll.u32 [#allocation2], 4
      %s23 = int_to_ptr.vmem [resolvable:$true] %s22
      %28 = dma.hbm_to_vmem [thread:$0]  %s21, 256, %s23, [#allocation3], 64, 64, 4
    $region5: #{tpu_custom_call.1} parent=1 // pred_fallthru
      _
    // Predicated region
    $region6: #{tpu_custom_call.1} parent=1 // pred_check
      _
    $region7: #{tpu_custom_call.1} parent=1 // pred_check_branch
      %30 = sbr.rel (0) target = $region9
    $region8: #{tpu_custom_call.1} parent=1 // pred_region
      %32 = vsyncadd [#allocation6], 0
      %s33 = sshll.u32 %s1, 4
      %s34 = int_to_ptr.hbm [resolvable:$true] %s33
      %s35 = sshll.u32 [#allocation5], 4
      %s36 = int_to_ptr.vmem [resolvable:$true] %s35
      %41 = dma.hbm_to_vmem [thread:$0]  %s34, 256, %s36, [#allocation6], 64, 64, 4
    $region9: #{tpu_custom_call.1} parent=1 // pred_fallthru
      _
    // Predicated region
    $region10: #{tpu_custom_call.1} parent=1 // pred_check
      _
    $region11: #{tpu_custom_call.1} parent=1 // pred_check_branch
      %43 = sbr.rel (0) target = $region13
    $region12: #{tpu_custom_call.1} parent=1 // pred_region
      _
    $region13: #{tpu_custom_call.1} parent=1 // pred_fallthru
      _
    // Predicated region
    $region14: #{tpu_custom_call.1} parent=1 // pred_check
      _
    $region15: #{tpu_custom_call.1} parent=1 // pred_check_branch
      %45 = sbr.rel (0) target = $region17
    $region16: #{tpu_custom_call.1} parent=1 // pred_region
      %47 = vsyncadd [#allocation6], 0
      %s48 = sshll.u32 %s3, 4
      %s49 = int_to_ptr.hbm [resolvable:$true] %s48
      %s50 = sshll.u32 [#allocation7], 4
      %s51 = int_to_ptr.vmem [resolvable:$true] %s50
      %56 = dma.hbm_to_vmem [thread:$0]  %s49, 1024, %s51, [#allocation6], 64, 64, 4
    $region17: #{tpu_custom_call.1} parent=1 // pred_fallthru
      _
    // Predicated region
    $region18: #{tpu_custom_call.1} parent=1 // pred_check
      _
    $region19: #{tpu_custom_call.1} parent=1 // pred_check_branch
      %58 = sbr.rel (0) target = $region21
    $region20: #{tpu_custom_call.1} parent=1 // pred_region
      _
    $region21: #{tpu_custom_call.1} parent=1 // pred_fallthru
      _
    // Predicated region
    $region22: #{tpu_custom_call.1} parent=1 // pred_check
      _
    $region23: #{tpu_custom_call.1} parent=1 // pred_check_branch
      %60 = sbr.rel (0) target = $region25
    $region24: #{tpu_custom_call.1} parent=1 // pred_region
      %62 = vsyncadd [#allocation9], 0
      %s63 = sshll.u32 %s5, 4
      %s64 = int_to_ptr.hbm [resolvable:$true] %s63
      %s65 = sshll.u32 [#allocation8], 4
      %s66 = int_to_ptr.vmem [resolvable:$true] %s65
      %71 = dma.hbm_to_vmem [thread:$0]  %s64, 1024, %s66, [#allocation9], 64, 64, 4
    $region25: #{tpu_custom_call.1} parent=1 // pred_fallthru
      _
    // Predicated region
    $region26: #{tpu_custom_call.1} parent=1 // pred_check
      _
    $region27: #{tpu_custom_call.1} parent=1 // pred_check_branch
      %73 = sbr.rel (0) target = $region29
    $region28: #{tpu_custom_call.1} parent=1 // pred_region
      _
    $region29: #{tpu_custom_call.1} parent=1 // pred_fallthru
      _
    // Predicated region
    $region30: #{tpu_custom_call.1} parent=1 // pred_check
      _
    $region31: #{tpu_custom_call.1} parent=1 // pred_check_branch
      %75 = sbr.rel (0) target = $region33
    $region32: #{tpu_custom_call.1} parent=1 // pred_region
      %77 = dma.done [#allocation3], 256
    $region33: #{tpu_custom_call.1} parent=1 // pred_fallthru
      _
    // Predicated region
    $region34: #{tpu_custom_call.1} parent=1 // pred_check
      _
    $region35: #{tpu_custom_call.1} parent=1 // pred_check_branch
      %79 = sbr.rel (0) target = $region37
    $region36: #{tpu_custom_call.1} parent=1 // pred_region
      %81 = dma.done [#allocation6], 256
    $region37: #{tpu_custom_call.1} parent=1 // pred_fallthru
      _
    // Predicated region
    $region38: #{tpu_custom_call.1} parent=1 // pred_check
      _
    $region39: #{tpu_custom_call.1} parent=1 // pred_check_branch
      %83 = sbr.rel (0) target = $region41
    $region40: #{tpu_custom_call.1} parent=1 // pred_region
      %85 = dma.done [#allocation6], 1024
    $region41: #{tpu_custom_call.1} parent=1 // pred_fallthru
      _
    // Predicated region
    $region42: #{tpu_custom_call.1} parent=1 // pred_check
      _
    $region43: #{tpu_custom_call.1} parent=1 // pred_check_branch
      %87 = sbr.rel (0) target = $region45
    $region44: #{tpu_custom_call.1} parent=1 // pred_region
      %89 = dma.done [#allocation9], 1024
    $region45: #{tpu_custom_call.1} parent=1 // pred_fallthru
      _
    %v91 = vld [vmem:[#allocation2] sm:$0xf]
    %v92 = vld [vmem:[#allocation2 + $0x4] sm:$0xf]
    %v93 = vld [vmem:[#allocation2 + $0x8] sm:$0xf]
    %v94 = vld [vmem:[#allocation2 + $0xc] sm:$0xf]
    %v95 = vld [vmem:[#allocation5] sm:$0xf]
    %v96 = vld [vmem:[#allocation5 + $0x4] sm:$0xf]
    %v97 = vld [vmem:[#allocation5 + $0x8] sm:$0xf]
    %v98 = vld [vmem:[#allocation5 + $0xc] sm:$0xf]
    %v99 = vld [vmem:[%s2] sm:$0x1]
    %v101 = vperm.slane %v99, 0
    %v107 = vunpack.c.l.b16 %v91
    %v108 = vunpack.c.l.b16 %v92
    %v109 = vunpack.c.l.b16 %v93
    %v110 = vunpack.c.l.b16 %v94
    %v111 = vpack.c.b16 %v108, %v107
    %v112 = vpack.c.b16 %v110, %v109
    %v117 = vunpack.c.l.b16 %v95
    %v118 = vunpack.c.l.b16 %v96
    %v119 = vunpack.c.l.b16 %v97
    %v120 = vunpack.c.l.b16 %v98
    %v121 = vpack.c.b16 %v118, %v117
    %v122 = vpack.c.b16 %v120, %v119
    %vm125 = vcmask 261120
    %v127 = vsel %vm125, %v111, 0
    %v130 = vsel %vm125, %v112, 0
    %132 = vmatpush.bf16.msra.mxu0 0
    %133 = vmatpush.bf16.msra.mxu0 0
    %134 = vmatpush.bf16.msra.mxu0 0
    %135 = vmatpush.bf16.msra.mxu0 0
    %136 = vmatpush.bf16.msra.mxu0 0
    %137 = vmatpush.bf16.msra.mxu0 0
    %138 = vmatpush.bf16.msra.mxu0 %v122
    %139 = vmatpush.bf16.msra.mxu0 %v121
    %140 = vmatmul.bf16.gmra.mxu0 %v127
    %v141 = vpop.f32.mrf.mxu0
    %v142 = vadd.f32 %v101, %v141
    %v143 = vpop.f32.mrf.mxu0
    %v144 = vadd.f32 %v101, %v143
    %145 = vmatmul.bf16.gmra.mxu0 %v130
    %v146 = vpop.f32.mrf.mxu0
    %v147 = vadd.f32 %v101, %v146
    %v148 = vpop.f32.mrf.mxu0
    %v149 = vadd.f32 %v101, %v148
    %150 = vdwg.mxu0
    %v151 = vmax.f32 %v142, 0.0
    %v152 = vmax.f32 %v144, 0.0
    %v153 = vmax.f32 %v147, 0.0
    %v154 = vmax.f32 %v149, 0.0
    %v155 = vpack.c.bf16 %v152, %v151
    %v156 = vpack.c.bf16 %v154, %v153
    %v157 = vld [vmem:[#allocation7] sm:$0xf]
    %v158 = vld [vmem:[#allocation7 + $0x4] sm:$0xf]
    %v159 = vld [vmem:[#allocation7 + $0x8] sm:$0xf]
    %v160 = vld [vmem:[#allocation7 + $0xc] sm:$0xf]
    %v161 = vld [vmem:[#allocation7 + $0x10] sm:$0xf]
    %v162 = vld [vmem:[#allocation7 + $0x14] sm:$0xf]
    %v163 = vld [vmem:[#allocation7 + $0x18] sm:$0xf]
    %v164 = vld [vmem:[#allocation7 + $0x1c] sm:$0xf]
    %v165 = vld [vmem:[#allocation7 + $0x20] sm:$0xf]
    %v166 = vld [vmem:[#allocation7 + $0x24] sm:$0xf]
    %v167 = vld [vmem:[#allocation7 + $0x28] sm:$0xf]
    %v168 = vld [vmem:[#allocation7 + $0x2c] sm:$0xf]
    %v169 = vld [vmem:[#allocation7 + $0x30] sm:$0xf]
    %v170 = vld [vmem:[#allocation7 + $0x34] sm:$0xf]
    %v171 = vld [vmem:[#allocation7 + $0x38] sm:$0xf]
    %v172 = vld [vmem:[#allocation7 + $0x3c] sm:$0xf]
    %v173 = vld [vmem:[%s4] sm:$0x1]
    %v175 = vperm.slane %v173, 0
    %v193 = vunpack.c.l.b16 %v157
    %v194 = vunpack.c.l.b16 %v158
    %v195 = vunpack.c.l.b16 %v159
    %v196 = vunpack.c.l.b16 %v160
    %v197 = vunpack.c.l.b16 %v161
    %v198 = vunpack.c.l.b16 %v162
    %v199 = vunpack.c.l.b16 %v163
    %v200 = vunpack.c.l.b16 %v164
    %v201 = vunpack.c.l.b16 %v165
    %v202 = vunpack.c.l.b16 %v166
    %v203 = vunpack.c.l.b16 %v167
    %v204 = vunpack.c.l.b16 %v168
    %v205 = vunpack.c.l.b16 %v169
    %v206 = vunpack.c.l.b16 %v170
    %v207 = vunpack.c.l.b16 %v171
    %v208 = vunpack.c.l.b16 %v172
    %v209 = vpack.c.b16 %v194, %v193
    %v210 = vpack.c.b16 %v196, %v195
    %v211 = vpack.c.b16 %v198, %v197
    %v212 = vpack.c.b16 %v200, %v199
    %v213 = vpack.c.b16 %v202, %v201
    %v214 = vpack.c.b16 %v204, %v203
    %v215 = vpack.c.b16 %v206, %v205
    %v216 = vpack.c.b16 %v208, %v207
    %225 = vmatpush.bf16.msra.mxu0 %v216
    %226 = vmatpush.bf16.msra.mxu0 %v215
    %227 = vmatpush.bf16.msra.mxu0 %v214
    %228 = vmatpush.bf16.msra.mxu0 %v213
    %229 = vmatpush.bf16.msra.mxu0 %v212
    %230 = vmatpush.bf16.msra.mxu0 %v211
    %231 = vmatpush.bf16.msra.mxu0 %v210
    %232 = vmatpush.bf16.msra.mxu0 %v209
    %233 = vmatmul.bf16.gmra.mxu0 %v155
    %v234 = vpop.f32.mrf.mxu0
    %v235 = vadd.f32 %v175, %v234
    %v236 = vpop.f32.mrf.mxu0
    %v237 = vadd.f32 %v175, %v236
    %238 = vmatmul.bf16.gmra.mxu0 %v156
    %v239 = vpop.f32.mrf.mxu0
    %v240 = vadd.f32 %v175, %v239
    %v241 = vpop.f32.mrf.mxu0
    %v242 = vadd.f32 %v175, %v241
    %243 = vdwg.mxu0
    %v244 = vmax.f32 %v235, 0.0
    %v245 = vmax.f32 %v237, 0.0
    %v246 = vmax.f32 %v240, 0.0
    %v247 = vmax.f32 %v242, 0.0
    %v248 = vpack.c.bf16 %v245, %v244
    %v249 = vpack.c.bf16 %v247, %v246
    %v250 = vld [vmem:[#allocation8] sm:$0xf]
    %v251 = vld [vmem:[#allocation8 + $0x4] sm:$0xf]
    %v252 = vld [vmem:[#allocation8 + $0x8] sm:$0xf]
    %v253 = vld [vmem:[#allocation8 + $0xc] sm:$0xf]
    %v254 = vld [vmem:[#allocation8 + $0x10] sm:$0xf]
    %v255 = vld [vmem:[#allocation8 + $0x14] sm:$0xf]
    %v256 = vld [vmem:[#allocation8 + $0x18] sm:$0xf]
    %v257 = vld [vmem:[#allocation8 + $0x1c] sm:$0xf]
    %v258 = vld [vmem:[#allocation8 + $0x20] sm:$0xf]
    %v259 = vld [vmem:[#allocation8 + $0x24] sm:$0xf]
    %v260 = vld [vmem:[#allocation8 + $0x28] sm:$0xf]
    %v261 = vld [vmem:[#allocation8 + $0x2c] sm:$0xf]
    %v262 = vld [vmem:[#allocation8 + $0x30] sm:$0xf]
    %v263 = vld [vmem:[#allocation8 + $0x34] sm:$0xf]
    %v264 = vld [vmem:[#allocation8 + $0x38] sm:$0xf]
    %v265 = vld [vmem:[#allocation8 + $0x3c] sm:$0xf]
    %v266 = vld [vmem:[%s6] sm:$0x1]
    %v268 = vperm.slane %v266, 0
    %v286 = vunpack.c.l.b16 %v250
    %v287 = vunpack.c.l.b16 %v251
    %v288 = vunpack.c.l.b16 %v252
    %v289 = vunpack.c.l.b16 %v253
    %v290 = vunpack.c.l.b16 %v254
    %v291 = vunpack.c.l.b16 %v255
    %v292 = vunpack.c.l.b16 %v256
    %v293 = vunpack.c.l.b16 %v257
    %v294 = vunpack.c.l.b16 %v258
    %v295 = vunpack.c.l.b16 %v259
    %v296 = vunpack.c.l.b16 %v260
    %v297 = vunpack.c.l.b16 %v261
    %v298 = vunpack.c.l.b16 %v262
    %v299 = vunpack.c.l.b16 %v263
    %v300 = vunpack.c.l.b16 %v264
    %v301 = vunpack.c.l.b16 %v265
    %v302 = vpack.c.b16 %v287, %v286
    %v303 = vpack.c.b16 %v289, %v288
    %v304 = vpack.c.b16 %v291, %v290
    %v305 = vpack.c.b16 %v293, %v292
    %v306 = vpack.c.b16 %v295, %v294
    %v307 = vpack.c.b16 %v297, %v296
    %v308 = vpack.c.b16 %v299, %v298
    %v309 = vpack.c.b16 %v301, %v300
    %318 = vmatpush.bf16.msra.mxu0 %v309
    %319 = vmatpush.bf16.msra.mxu0 %v308
    %320 = vmatpush.bf16.msra.mxu0 %v307
    %321 = vmatpush.bf16.msra.mxu0 %v306
    %322 = vmatpush.bf16.msra.mxu0 %v305
    %323 = vmatpush.bf16.msra.mxu0 %v304
    %324 = vmatpush.bf16.msra.mxu0 %v303
    %325 = vmatpush.bf16.msra.mxu0 %v302
    %326 = vmatmul.bf16.gmra.mxu0 %v248
    %v327 = vpop.f32.mrf.mxu0
    %v328 = vadd.f32 %v268, %v327
    %v329 = vpop.f32.mrf.mxu0
    %v330 = vadd.f32 %v268, %v329
    %331 = vmatmul.bf16.gmra.mxu0 %v249
    %v332 = vpop.f32.mrf.mxu0
    %v333 = vadd.f32 %v268, %v332
    %v334 = vpop.f32.mrf.mxu0
    %v335 = vadd.f32 %v268, %v334
    %336 = vdwg.mxu0
    %v337 = vlaneseq
    %v338 = vand.u32 %v337, 127
    %vm339 = vcmp.lt.s32.totalorder %v338, 16
    %v340 = vtanh.pop %v328
    %v341 = vtanh.pop %v330
    %v342 = vtanh.pop %v333
    %v343 = vtanh.pop %v335
    %v344 = vsel %vm339, %v340, %v328
    %v345 = vsel %vm339, %v341, %v330
    %v346 = vsel %vm339, %v342, %v333
    %v347 = vsel %vm339, %v343, %v335
    %348 = vst [vmem:[#allocation10] sm:$0xff] %v344
    %349 = vst [vmem:[#allocation10 + $0x8] sm:$0xff] %v345
    %350 = vst [vmem:[#allocation10 + $0x10] sm:$0xff] %v346
    %351 = vst [vmem:[#allocation10 + $0x18] sm:$0xff] %v347
    // Predicated region
    $region46: #{tpu_custom_call.1} parent=1 // pred_check
      _
    $region47: #{tpu_custom_call.1} parent=1 // pred_check_branch
      %353 = sbr.rel (0) target = $region49
    $region48: #{tpu_custom_call.1} parent=1 // pred_region
      %355 = vsyncadd [#allocation4], 0
      %s356 = sshll.u32 [#allocation10], 4
      %s357 = int_to_ptr.vmem [resolvable:$true] %s356
      %s358 = sshll.u32 %s7, 4
      %s359 = int_to_ptr.hbm [resolvable:$true] %s358
      %364 = dma.vmem_to_hbm [thread:$0]  %s357, 512, %s359, [#allocation4], 128, 128, 8
    $region49: #{tpu_custom_call.1} parent=1 // pred_fallthru
      _
    // Predicated region
    $region50: #{tpu_custom_call.1} parent=1 // pred_check
      _
    $region51: #{tpu_custom_call.1} parent=1 // pred_check_branch
      %366 = sbr.rel (0) target = $region53
    $region52: #{tpu_custom_call.1} parent=1 // pred_region
      %368 = dma.done [#allocation4], 512
    $region53: #{tpu_custom_call.1} parent=1 // pred_fallthru
      _
    %369 = vsyncpa [#allocation3], 1
    %370 = vsyncpa [#allocation6], 1
    %371 = vsyncpa [#allocation9], 1
    %372 = vsyncpa [#allocation4], 1

// kernel: tpu_custom_call.1
$region0: #{tpu_custom_call.1}
  #allocation0 [shape = 'u32[]', space=smem, size = 0x4, offset = 0x4, fixed_abs, tag = 'smem constant byte address 0x4 - core index']
  #allocation1 [shape = 'u32[72,128]{1,0:T(1,128)}', space=vmem, size = 0x9000, scoped, tag = 'internal scratch']
  %s0 = inlined_call_operand.hbm [shape: bf16[32,32], index: 0, kind: input, shape index: {}]
  %s1 = inlined_call_operand.hbm [shape: bf16[32,128], index: 1, kind: input, shape index: {}]
  %s2 = inlined_call_operand.vmem [shape: f32[1,128], index: 2, kind: input, shape index: {}]
  %s3 = inlined_call_operand.hbm [shape: bf16[128,128], index: 3, kind: input, shape index: {}]
  %s4 = inlined_call_operand.vmem [shape: f32[1,128], index: 4, kind: input, shape index: {}]
  %s5 = inlined_call_operand.hbm [shape: bf16[128,128], index: 5, kind: input, shape index: {}]
  %s6 = inlined_call_operand.vmem [shape: f32[1,128], index: 6, kind: input, shape index: {}]
  %s7 = inlined_call_operand.hbm [shape: f32[32,128], index: 7, kind: output, shape index: {}]
  %s8 = sld [smem:[#allocation0]]
  $region54: #{tpu_custom_call.1} parent=0
    _
  %s10 = ssub.s32 1, %s8
  %s11 = scalar_select 0, %s10, %s8
  $region1: #{tpu_custom_call.1} parent=0
    #allocation2 [shape = 'u8[8192]{0}', space=vmem, size = 0x2000, scoped, tag = 'input window, operand 0, single buffered']
    #allocation3 [shape = 's32[1]{0}', space=sflag, size = 0x4, scoped, tag = 'scoped memory for tpu_custom_call.1']
    #allocation4 [shape = 's32[1]{0}', space=sflag, size = 0x4, scoped, tag = 'scoped memory for tpu_custom_call.1']
    #allocation5 [shape = 'u8[8192]{0}', space=vmem, size = 0x2000, scoped, tag = 'input window, operand 1, single buffered']
    #allocation6 [shape = 's32[1]{0}', space=sflag, size = 0x4, scoped, tag = 'scoped memory for tpu_custom_call.1']
    #allocation7 [shape = 'u8[32768]{0}', space=vmem, size = 0x8000, scoped, tag = 'input window, operand 3, single buffered']
    #allocation8 [shape = 'u8[32768]{0}', space=vmem, size = 0x8000, scoped, tag = 'input window, operand 5, single buffered']
    #allocation9 [shape = 's32[1]{0}', space=sflag, size = 0x4, scoped, tag = 'scoped memory for tpu_custom_call.1']
    #allocation10 [shape = 'u8[16384]{0}', space=vmem, size = 0x4000, scoped, tag = 'output window, operand 0, single buffered']
    %12 = vsyncpa [#allocation3], 0
    %13 = vsyncpa [#allocation6], 0
    %14 = vsyncpa [#allocation9], 0
    %15 = vsyncpa [#allocation4], 0
    // Predicated region
    $region2: #{tpu_custom_call.1} parent=1 // pred_check
      _
    $region3: #{tpu_custom_call.1} parent=1 // pred_check_branch
      %17 = sbr.rel (0) target = $region5
    $region4: #{tpu_custom_call.1} parent=1 // pred_region
      %19 = vsyncadd [#allocation3], 0
      %s20 = sshll.u32 %s0, 4
      %s21 = int_to_ptr.hbm [resolvable:$true] %s20
      %s22 = sshll.u32 [#allocation2], 4
      %s23 = int_to_ptr.vmem [resolvable:$true] %s22
      %28 = dma.hbm_to_vmem [thread:$0]  %s21, 256, %s23, [#allocation3], 64, 64, 4
    $region5: #{tpu_custom_call.1} parent=1 // pred_fallthru
      _
    // Predicated region
    $region6: #{tpu_custom_call.1} parent=1 // pred_check
      _
    $region7: #{tpu_custom_call.1} parent=1 // pred_check_branch
      %30 = sbr.rel (0) target = $region9
    $region8: #{tpu_custom_call.1} parent=1 // pred_region
      %32 = vsyncadd [#allocation6], 0
      %s33 = sshll.u32 %s1, 4
      %s34 = int_to_ptr.hbm [resolvable:$true] %s33
      %s35 = sshll.u32 [#allocation5], 4
      %s36 = int_to_ptr.vmem [resolvable:$true] %s35
      %41 = dma.hbm_to_vmem [thread:$0]  %s34, 256, %s36, [#allocation6], 64, 64, 4
    $region9: #{tpu_custom_call.1} parent=1 // pred_fallthru
      _
    // Predicated region
    $region10: #{tpu_custom_call.1} parent=1 // pred_check
      _
    $region11: #{tpu_custom_call.1} parent=1 // pred_check_branch
      %43 = sbr.rel (0) target = $region13
    $region12: #{tpu_custom_call.1} parent=1 // pred_region
      _
    $region13: #{tpu_custom_call.1} parent=1 // pred_fallthru
      _
    // Predicated region
    $region14: #{tpu_custom_call.1} parent=1 // pred_check
      _
    $region15: #{tpu_custom_call.1} parent=1 // pred_check_branch
      %45 = sbr.rel (0) target = $region17
    $region16: #{tpu_custom_call.1} parent=1 // pred_region
      %47 = vsyncadd [#allocation6], 0
      %s48 = sshll.u32 %s3, 4
      %s49 = int_to_ptr.hbm [resolvable:$true] %s48
      %s50 = sshll.u32 [#allocation7], 4
      %s51 = int_to_ptr.vmem [resolvable:$true] %s50
      %56 = dma.hbm_to_vmem [thread:$0]  %s49, 1024, %s51, [#allocation6], 64, 64, 4
    $region17: #{tpu_custom_call.1} parent=1 // pred_fallthru
      _
    // Predicated region
    $region18: #{tpu_custom_call.1} parent=1 // pred_check
      _
    $region19: #{tpu_custom_call.1} parent=1 // pred_check_branch
      %58 = sbr.rel (0) target = $region21
    $region20: #{tpu_custom_call.1} parent=1 // pred_region
      _
    $region21: #{tpu_custom_call.1} parent=1 // pred_fallthru
      _
    // Predicated region
    $region22: #{tpu_custom_call.1} parent=1 // pred_check
      _
    $region23: #{tpu_custom_call.1} parent=1 // pred_check_branch
      %60 = sbr.rel (0) target = $region25
    $region24: #{tpu_custom_call.1} parent=1 // pred_region
      %62 = vsyncadd [#allocation9], 0
      %s63 = sshll.u32 %s5, 4
      %s64 = int_to_ptr.hbm [resolvable:$true] %s63
      %s65 = sshll.u32 [#allocation8], 4
      %s66 = int_to_ptr.vmem [resolvable:$true] %s65
      %71 = dma.hbm_to_vmem [thread:$0]  %s64, 1024, %s66, [#allocation9], 64, 64, 4
    $region25: #{tpu_custom_call.1} parent=1 // pred_fallthru
      _
    // Predicated region
    $region26: #{tpu_custom_call.1} parent=1 // pred_check
      _
    $region27: #{tpu_custom_call.1} parent=1 // pred_check_branch
      %73 = sbr.rel (0) target = $region29
    $region28: #{tpu_custom_call.1} parent=1 // pred_region
      _
    $region29: #{tpu_custom_call.1} parent=1 // pred_fallthru
      _
    // Predicated region
    $region30: #{tpu_custom_call.1} parent=1 // pred_check
      _
    $region31: #{tpu_custom_call.1} parent=1 // pred_check_branch
      %75 = sbr.rel (0) target = $region33
    $region32: #{tpu_custom_call.1} parent=1 // pred_region
      %77 = dma.done [#allocation3], 256
    $region33: #{tpu_custom_call.1} parent=1 // pred_fallthru
      _
    // Predicated region
    $region34: #{tpu_custom_call.1} parent=1 // pred_check
      _
    $region35: #{tpu_custom_call.1} parent=1 // pred_check_branch
      %79 = sbr.rel (0) target = $region37
    $region36: #{tpu_custom_call.1} parent=1 // pred_region
      %81 = dma.done [#allocation6], 256
    $region37: #{tpu_custom_call.1} parent=1 // pred_fallthru
      _
    // Predicated region
    $region38: #{tpu_custom_call.1} parent=1 // pred_check
      _
    $region39: #{tpu_custom_call.1} parent=1 // pred_check_branch
      %83 = sbr.rel (0) target = $region41
    $region40: #{tpu_custom_call.1} parent=1 // pred_region
      %85 = dma.done [#allocation6], 1024
    $region41: #{tpu_custom_call.1} parent=1 // pred_fallthru
      _
    // Predicated region
    $region42: #{tpu_custom_call.1} parent=1 // pred_check
      _
    $region43: #{tpu_custom_call.1} parent=1 // pred_check_branch
      %87 = sbr.rel (0) target = $region45
    $region44: #{tpu_custom_call.1} parent=1 // pred_region
      %89 = dma.done [#allocation9], 1024
    $region45: #{tpu_custom_call.1} parent=1 // pred_fallthru
      _
    %v91 = vld [vmem:[#allocation2] sm:$0xf]
    %v92 = vld [vmem:[#allocation2 + $0x4] sm:$0xf]
    %v93 = vld [vmem:[#allocation2 + $0x8] sm:$0xf]
    %v94 = vld [vmem:[#allocation2 + $0xc] sm:$0xf]
    %v95 = vld [vmem:[#allocation5] sm:$0xf]
    %v96 = vld [vmem:[#allocation5 + $0x4] sm:$0xf]
    %v97 = vld [vmem:[#allocation5 + $0x8] sm:$0xf]
    %v98 = vld [vmem:[#allocation5 + $0xc] sm:$0xf]
    %v99 = vld [vmem:[%s2] sm:$0x1]
    %v101 = vperm.slane %v99, 0
    %v107 = vunpack.c.l.b16 %v91
    %v108 = vunpack.c.l.b16 %v92
    %v109 = vunpack.c.l.b16 %v93
    %v110 = vunpack.c.l.b16 %v94
    %v111 = vpack.c.b16 %v108, %v107
    %v112 = vpack.c.b16 %v110, %v109
    %v117 = vunpack.c.l.b16 %v95
    %v118 = vunpack.c.l.b16 %v96
    %v119 = vunpack.c.l.b16 %v97
    %v120 = vunpack.c.l.b16 %v98
    %v121 = vpack.c.b16 %v118, %v117
    %v122 = vpack.c.b16 %v120, %v119
    %vm125 = vcmask 261120
    %v127 = vsel %vm125, %v111, 0
    %v130 = vsel %vm125, %v112, 0
    %132 = vmatpush.bf16.msra.mxu0 0
    %133 = vmatpush.bf16.msra.mxu0 0
    %134 = vmatpush.bf16.msra.mxu0 0
    %135 = vmatpush.bf16.msra.mxu0 0
    %136 = vmatpush.bf16.msra.mxu0 0
    %137 = vmatpush.bf16.msra.mxu0 0
    %138 = vmatpush.bf16.msra.mxu0 %v122
    %139 = vmatpush.bf16.msra.mxu0 %v121
    %140 = vmatmul.bf16.gmra.mxu0 %v127
    %v141 = vpop.f32.mrf.mxu0
    %v142 = vadd.f32 %v101, %v141
    %v143 = vpop.f32.mrf.mxu0
    %v144 = vadd.f32 %v101, %v143
    %145 = vmatmul.bf16.gmra.mxu0 %v130
    %v146 = vpop.f32.mrf.mxu0
    %v147 = vadd.f32 %v101, %v146
    %v148 = vpop.f32.mrf.mxu0
    %v149 = vadd.f32 %v101, %v148
    %150 = vdwg.mxu0
    %v151 = vmax.f32 %v142, 0.0
    %v152 = vmax.f32 %v144, 0.0
    %v153 = vmax.f32 %v147, 0.0
    %v154 = vmax.f32 %v149, 0.0
    %v155 = vpack.c.bf16 %v152, %v151
    %v156 = vpack.c.bf16 %v154, %v153
    %v157 = vld [vmem:[#allocation7] sm:$0xf]
    %v158 = vld [vmem:[#allocation7 + $0x4] sm:$0xf]
    %v159 = vld [vmem:[#allocation7 + $0x8] sm:$0xf]
    %v160 = vld [vmem:[#allocation7 + $0xc] sm:$0xf]
    %v161 = vld [vmem:[#allocation7 + $0x10] sm:$0xf]
    %v162 = vld [vmem:[#allocation7 + $0x14] sm:$0xf]
    %v163 = vld [vmem:[#allocation7 + $0x18] sm:$0xf]
    %v164 = vld [vmem:[#allocation7 + $0x1c] sm:$0xf]
    %v165 = vld [vmem:[#allocation7 + $0x20] sm:$0xf]
    %v166 = vld [vmem:[#allocation7 + $0x24] sm:$0xf]
    %v167 = vld [vmem:[#allocation7 + $0x28] sm:$0xf]
    %v168 = vld [vmem:[#allocation7 + $0x2c] sm:$0xf]
    %v169 = vld [vmem:[#allocation7 + $0x30] sm:$0xf]
    %v170 = vld [vmem:[#allocation7 + $0x34] sm:$0xf]
    %v171 = vld [vmem:[#allocation7 + $0x38] sm:$0xf]
    %v172 = vld [vmem:[#allocation7 + $0x3c] sm:$0xf]
    %v173 = vld [vmem:[%s4] sm:$0x1]
    %v175 = vperm.slane %v173, 0
    %v193 = vunpack.c.l.b16 %v157
    %v194 = vunpack.c.l.b16 %v158
    %v195 = vunpack.c.l.b16 %v159
    %v196 = vunpack.c.l.b16 %v160
    %v197 = vunpack.c.l.b16 %v161
    %v198 = vunpack.c.l.b16 %v162
    %v199 = vunpack.c.l.b16 %v163
    %v200 = vunpack.c.l.b16 %v164
    %v201 = vunpack.c.l.b16 %v165
    %v202 = vunpack.c.l.b16 %v166
    %v203 = vunpack.c.l.b16 %v167
    %v204 = vunpack.c.l.b16 %v168
    %v205 = vunpack.c.l.b16 %v169
    %v206 = vunpack.c.l.b16 %v170
    %v207 = vunpack.c.l.b16 %v171
    %v208 = vunpack.c.l.b16 %v172
    %v209 = vpack.c.b16 %v194, %v193
    %v210 = vpack.c.b16 %v196, %v195
    %v211 = vpack.c.b16 %v198, %v197
    %v212 = vpack.c.b16 %v200, %v199
    %v213 = vpack.c.b16 %v202, %v201
    %v214 = vpack.c.b16 %v204, %v203
    %v215 = vpack.c.b16 %v206, %v205
    %v216 = vpack.c.b16 %v208, %v207
    %225 = vmatpush.bf16.msra.mxu0 %v216
    %226 = vmatpush.bf16.msra.mxu0 %v215
    %227 = vmatpush.bf16.msra.mxu0 %v214
    %228 = vmatpush.bf16.msra.mxu0 %v213
    %229 = vmatpush.bf16.msra.mxu0 %v212
    %230 = vmatpush.bf16.msra.mxu0 %v211
    %231 = vmatpush.bf16.msra.mxu0 %v210
    %232 = vmatpush.bf16.msra.mxu0 %v209
    %233 = vmatmul.bf16.gmra.mxu0 %v155
    %v234 = vpop.f32.mrf.mxu0
    %v235 = vadd.f32 %v175, %v234
    %v236 = vpop.f32.mrf.mxu0
    %v237 = vadd.f32 %v175, %v236
    %238 = vmatmul.bf16.gmra.mxu0 %v156
    %v239 = vpop.f32.mrf.mxu0
    %v240 = vadd.f32 %v175, %v239
    %v241 = vpop.f32.mrf.mxu0
    %v242 = vadd.f32 %v175, %v241
    %243 = vdwg.mxu0
    %v244 = vmax.f32 %v235, 0.0
    %v245 = vmax.f32 %v237, 0.0
    %v246 = vmax.f32 %v240, 0.0
    %v247 = vmax.f32 %v242, 0.0
    %v248 = vpack.c.bf16 %v245, %v244
    %v249 = vpack.c.bf16 %v247, %v246
    %v250 = vld [vmem:[#allocation8] sm:$0xf]
    %v251 = vld [vmem:[#allocation8 + $0x4] sm:$0xf]
    %v252 = vld [vmem:[#allocation8 + $0x8] sm:$0xf]
    %v253 = vld [vmem:[#allocation8 + $0xc] sm:$0xf]
    %v254 = vld [vmem:[#allocation8 + $0x10] sm:$0xf]
    %v255 = vld [vmem:[#allocation8 + $0x14] sm:$0xf]
    %v256 = vld [vmem:[#allocation8 + $0x18] sm:$0xf]
    %v257 = vld [vmem:[#allocation8 + $0x1c] sm:$0xf]
    %v258 = vld [vmem:[#allocation8 + $0x20] sm:$0xf]
    %v259 = vld [vmem:[#allocation8 + $0x24] sm:$0xf]
    %v260 = vld [vmem:[#allocation8 + $0x28] sm:$0xf]
    %v261 = vld [vmem:[#allocation8 + $0x2c] sm:$0xf]
    %v262 = vld [vmem:[#allocation8 + $0x30] sm:$0xf]
    %v263 = vld [vmem:[#allocation8 + $0x34] sm:$0xf]
    %v264 = vld [vmem:[#allocation8 + $0x38] sm:$0xf]
    %v265 = vld [vmem:[#allocation8 + $0x3c] sm:$0xf]
    %v266 = vld [vmem:[%s6] sm:$0x1]
    %v268 = vperm.slane %v266, 0
    %v286 = vunpack.c.l.b16 %v250
    %v287 = vunpack.c.l.b16 %v251
    %v288 = vunpack.c.l.b16 %v252
    %v289 = vunpack.c.l.b16 %v253
    %v290 = vunpack.c.l.b16 %v254
    %v291 = vunpack.c.l.b16 %v255
    %v292 = vunpack.c.l.b16 %v256
    %v293 = vunpack.c.l.b16 %v257
    %v294 = vunpack.c.l.b16 %v258
    %v295 = vunpack.c.l.b16 %v259
    %v296 = vunpack.c.l.b16 %v260
    %v297 = vunpack.c.l.b16 %v261
    %v298 = vunpack.c.l.b16 %v262
    %v299 = vunpack.c.l.b16 %v263
    %v300 = vunpack.c.l.b16 %v264
    %v301 = vunpack.c.l.b16 %v265
    %v302 = vpack.c.b16 %v287, %v286
    %v303 = vpack.c.b16 %v289, %v288
    %v304 = vpack.c.b16 %v291, %v290
    %v305 = vpack.c.b16 %v293, %v292
    %v306 = vpack.c.b16 %v295, %v294
    %v307 = vpack.c.b16 %v297, %v296
    %v308 = vpack.c.b16 %v299, %v298
    %v309 = vpack.c.b16 %v301, %v300
    %318 = vmatpush.bf16.msra.mxu0 %v309
    %319 = vmatpush.bf16.msra.mxu0 %v308
    %320 = vmatpush.bf16.msra.mxu0 %v307
    %321 = vmatpush.bf16.msra.mxu0 %v306
    %322 = vmatpush.bf16.msra.mxu0 %v305
    %323 = vmatpush.bf16.msra.mxu0 %v304
    %324 = vmatpush.bf16.msra.mxu0 %v303
    %325 = vmatpush.bf16.msra.mxu0 %v302
    %326 = vmatmul.bf16.gmra.mxu0 %v248
    %v327 = vpop.f32.mrf.mxu0
    %v328 = vadd.f32 %v268, %v327
    %v329 = vpop.f32.mrf.mxu0
    %v330 = vadd.f32 %v268, %v329
    %331 = vmatmul.bf16.gmra.mxu0 %v249
    %v332 = vpop.f32.mrf.mxu0
    %v333 = vadd.f32 %v268, %v332
    %v334 = vpop.f32.mrf.mxu0
    %v335 = vadd.f32 %v268, %v334
    %336 = vdwg.mxu0
    %v337 = vlaneseq
    %v338 = vand.u32 %v337, 127
    %vm339 = vcmp.lt.s32.totalorder %v338, 16
    %v340 = vtanh.pop %v328
    %v341 = vtanh.pop %v330
    %v342 = vtanh.pop %v333
    %v343 = vtanh.pop %v335
    %v344 = vsel %vm339, %v340, %v328
    %v345 = vsel %vm339, %v341, %v330
    %v346 = vsel %vm339, %v342, %v333
    %v347 = vsel %vm339, %v343, %v335
    %348 = vst [vmem:[#allocation10] sm:$0xff] %v344
    %349 = vst [vmem:[#allocation10 + $0x8] sm:$0xff] %v345
    %350 = vst [vmem:[#allocation10 + $0x10] sm:$0xff] %v346
    %351 = vst [vmem:[#allocation10 + $0x18] sm:$0xff] %v347
    // Predicated region
    $region46: #{tpu_custom_call.1} parent=1 // pred_check
      _
    $region47: #{tpu_custom_call.1} parent=1 // pred_check_branch
      %353 = sbr.rel (0) target = $region49
    $region48: #{tpu_custom_call.1} parent=1 // pred_region
      %355 = vsyncadd [#allocation4], 0
      %s356 = sshll.u32 [#allocation10], 4
      %s357 = int_to_ptr.vmem [resolvable:$true] %s356
      %s358 = sshll.u32 %s7, 4
      %s359 = int_to_ptr.hbm [resolvable:$true] %s358
      %364 = dma.vmem_to_hbm [thread:$0]  %s357, 512, %s359, [#allocation4], 128, 128, 8
    $region49: #{tpu_custom_call.1} parent=1 // pred_fallthru
      _
    // Predicated region
    $region50: #{tpu_custom_call.1} parent=1 // pred_check
      _
    $region51: #{tpu_custom_call.1} parent=1 // pred_check_branch
      %366 = sbr.rel (0) target = $region53
    $region52: #{tpu_custom_call.1} parent=1 // pred_region
      %368 = dma.done [#allocation4], 512
    $region53: #{tpu_custom_call.1} parent=1 // pred_fallthru
      _
    %369 = vsyncpa [#allocation3], 1
    %370 = vsyncpa [#allocation6], 1
    %371 = vsyncpa [#allocation9], 1
    %372 = vsyncpa [#allocation4], 1

</llo_original>
